<compile_context>
chip_gen: v7x
topology: tpu7x:2x2x1
jax: 0.10.0
libtpu: 0.0.40
codegen_flags: <defaults>
</compile_context>

<pallas_src>
import functools

import jax
import jax.numpy as jnp
from jax import lax
from jax.experimental import pallas as pl
from jax.experimental.pallas import tpu as pltpu


def _round_up(x, m):
    return (x + m - 1) // m * m


def _cdiv(a, b):
    return (a + b - 1) // b


def _focal_loss_kernel(x_ref, t_ref, *refs, gamma, num_classes, col_mask,
                       has_alpha):
    if has_alpha:
        at_ref, out_ref, m_sc, l_sc, tgt_sc = refs
    else:
        at_ref = None
        out_ref, m_sc, l_sc, tgt_sc = refs

    ci = pl.program_id(1)

    @pl.when(ci == 0)
    def _init():
        # Finite sentinel (not -inf) so the online-LSE rescale never sees
        # inf - inf.
        m_sc[...] = jnp.full(m_sc.shape, -1e30, dtype=jnp.float32)
        l_sc[...] = jnp.zeros_like(l_sc)
        tgt_sc[...] = jnp.zeros_like(tgt_sc)

    x = x_ref[...].astype(jnp.float32)            # [TN, TC]
    tn, tc = x.shape
    tgt = t_ref[...]                              # [TN, 1] int32

    # Grid-invariant local column index.
    col = lax.broadcasted_iota(jnp.int32, (tn, tc), 1)

    if col_mask:
        # Only compiled in when C % TC != 0: mask columns past num_classes
        # with a large-negative (finite) sentinel so exp(...) -> 0 and they
        # never win the row max.
        lim = num_classes - ci * tc               # traced scalar
        x = jnp.where(col < lim, x, -1e30)

    # One-hot of the target column inside this tile ([TN,1] subtract, not a
    # full [TN,TC] add).
    hit = col == (tgt - ci * tc)                  # [TN, TC]

    # Online logsumexp over the class axis.
    m_prev = m_sc[...]
    m_new = jnp.maximum(m_prev, jnp.max(x, axis=-1, keepdims=True))
    l_sc[...] = l_sc[...] * jnp.exp(m_prev - m_new) + jnp.sum(
        jnp.exp(x - m_new), axis=-1, keepdims=True)
    m_sc[...] = m_new

    # Gather the target logit for this tile.
    tgt_sc[...] = tgt_sc[...] + jnp.sum(
        jnp.where(hit, x, 0.0), axis=-1, keepdims=True)

    @pl.when(ci == pl.num_programs(1) - 1)
    def _finalize():
        lse = m_sc[...] + jnp.log(l_sc[...])      # [TN, 1]
        # Clamp: a few ulps of rounding must not make pt > 1 (would feed a
        # negative base into pow).
        logpt = jnp.minimum(tgt_sc[...] - lse, 0.0)
        pt = jnp.exp(logpt)
        one_minus_pt = 1.0 - pt
        if float(gamma).is_integer():
            w = lax.integer_pow(one_minus_pt, int(gamma))
        else:
            w = one_minus_pt ** gamma
        if has_alpha:
            logpt = logpt * at_ref[...]           # per-row alpha, gathered in wrapper
        loss = -w * logpt
        # Lane-dense per-row output (rows of this tile laid out along lanes).
        out_ref[...] = loss.reshape(1, 1, tn)


def focal_loss(logits, targets, gamma=2.0, alpha=None,
               block_n=512, block_c=2048):
    """logits: [N, C] float (f32 or bf16); targets: [N] int; alpha: None or [C]."""
    n, c = logits.shape

    tc = min(block_c, _round_up(c, 128))
    tn = min(block_n, _round_up(n, 8))
    # Guarantee >= 2 row tiles when N allows, so the "parallel" row axis can
    # be split across both v7x TensorCores (no effect on v5e/v6e).
    if _cdiv(n, tn) < 2:
        tn = max(8, _round_up(_cdiv(n, 2), 8))

    grid = (_cdiv(n, tn), _cdiv(c, tc))

    t = targets.astype(jnp.int32).reshape(-1, 1)          # [N, 1]

    inputs = [logits, t]
    in_specs = [
        pl.BlockSpec((tn, tc), lambda i, ci: (i, ci)),     # logits tile
        pl.BlockSpec((tn, 1), lambda i, ci: (i, 0)),       # targets
    ]

    has_alpha = alpha is not None
    if has_alpha:
        # Tiny [N,1] gather done once in the wrapper instead of a per-tile
        # one-hot select + cross-lane reduce in the kernel.
        at = jnp.asarray(alpha, jnp.float32)[targets.astype(jnp.int32)]
        inputs.append(at.reshape(-1, 1))
        in_specs.append(pl.BlockSpec((tn, 1), lambda i, ci: (i, 0)))

    kernel = functools.partial(
        _focal_loss_kernel,
        gamma=float(gamma),
        num_classes=c,
        col_mask=(c % tc != 0),
        has_alpha=has_alpha,
    )

    out = pl.pallas_call(
        kernel,
        out_shape=jax.ShapeDtypeStruct((grid[0], 1, tn), jnp.float32),
        grid_spec=pltpu.PrefetchScalarGridSpec(
            num_scalar_prefetch=0,
            grid=grid,
            in_specs=in_specs,
            out_specs=pl.BlockSpec((1, 1, tn), lambda i, ci: (i, 0, 0)),
            scratch_shapes=[pltpu.VMEM((tn, 1), jnp.float32)] * 3,
        ),
        compiler_params=pltpu.CompilerParams(
            dimension_semantics=("parallel", "arbitrary"),
            vmem_limit_bytes=48 * 1024 * 1024,
        ),
    )(*inputs)

    per_row = out.reshape(-1)[:n]   # drop row overhang of the last row tile
    return jnp.mean(per_row)        # final mean in the wrapper


def focal_loss_reference(logits, targets, gamma=2.0, alpha=None):
    """Pure-JAX reference matching the PyTorch FocalLoss forward."""
    logp = jax.nn.log_softmax(logits.astype(jnp.float32), axis=1)
    logpt = jnp.take_along_axis(
        logp, targets[:, None].astype(jnp.int32), axis=1)[:, 0]
    pt = jnp.exp(logpt)
    if alpha is not None:
        at = jnp.asarray(alpha, jnp.float32)[targets]
        logpt = logpt * at
    return jnp.mean(-((1.0 - pt) ** gamma) * logpt)


if __name__ == "__main__":
    key = jax.random.PRNGKey(0)

    # Small shapes consistent with the module's forward: inputs [N, C], targets [N].
    N, C = 8, 32
    k1, k2 = jax.random.split(key)
    logits = jax.random.normal(k1, (N, C), dtype=jnp.float32) * 2.0
    targets = jax.random.randint(k2, (N,), 0, C, dtype=jnp.int32)

    # Default module config: gamma=2.0, alpha=None.
    loss = focal_loss(logits, targets, gamma=2.0, alpha=None)
    jax.block_until_ready(loss)
    ref = focal_loss_reference(logits, targets, gamma=2.0, alpha=None)
    assert jnp.allclose(loss, ref, atol=2e-5, rtol=1e-4), (loss, ref)

    # Per-class alpha path.
    alpha = jnp.linspace(0.5, 1.5, C, dtype=jnp.float32)
    loss_a = focal_loss(logits, targets, gamma=2.0, alpha=alpha)
    jax.block_until_ready(loss_a)
    ref_a = focal_loss_reference(logits, targets, gamma=2.0, alpha=alpha)
    assert jnp.allclose(loss_a, ref_a, atol=2e-5, rtol=1e-4), (loss_a, ref_a)

    # Odd shapes: multiple row tiles (partial last tile) + multiple class
    # tiles with a non-aligned C, exercising the in-kernel column mask.
    N2, C2 = 20, 300
    k3, k4 = jax.random.split(k2)
    logits2 = jax.random.normal(k3, (N2, C2), dtype=jnp.float32) * 3.0
    targets2 = jax.random.randint(k4, (N2,), 0, C2, dtype=jnp.int32)
    loss2 = focal_loss(logits2, targets2, gamma=2.0, alpha=None,
                       block_n=8, block_c=128)
    jax.block_until_ready(loss2)
    ref2 = focal_loss_reference(logits2, targets2, gamma=2.0, alpha=None)
    assert jnp.allclose(loss2, ref2, atol=2e-5, rtol=1e-4), (loss2, ref2)

    print("KERNEL_OK")
</pallas_src>

<mosaic_0001>
module attributes {stable_mosaic.version = 11 : i64} {
  func.func @_focal_loss_kernel(%arg0: i32, %arg1: i32, %arg2: memref<8x128xf32, #tpu.memory_space<vmem>>, %arg3: memref<8x1xi32, #tpu.memory_space<vmem>>, %arg4: memref<1x1x8xf32, #tpu.memory_space<vmem>>, %arg5: memref<8x1xf32, #tpu.memory_space<vmem>>, %arg6: memref<8x1xf32, #tpu.memory_space<vmem>>, %arg7: memref<8x1xf32, #tpu.memory_space<vmem>>) attributes {dimension_semantics = [#tpu.dimension_semantics<parallel>, #tpu.dimension_semantics<arbitrary>], iteration_bounds = array<i64: 1, 1>, scalar_prefetch = 0 : i64, scratch_operands = 3 : i64, tpu.core_type = #tpu.core_type<tc>, window_params = [{transform_indices = @transform_0, window_bounds = array<i64: 8, 128>}, {transform_indices = @transform_1, window_bounds = array<i64: 8, 1>}, {transform_indices = @transform_2, window_bounds = array<i64: 1, 1, 8>}]} {
    %c0_i32 = arith.constant 0 : i32
    %0 = arith.cmpi eq, %arg1, %c0_i32 : i32
    %1 = arith.extui %0 : i1 to i32
    %c0_i32_0 = arith.constant 0 : i32
    %2 = arith.cmpi ne, %1, %c0_i32_0 : i32
    scf.if %2 {
      %cst_23 = arith.constant -1.000000e+30 : f32
      %43 = vector.broadcast %cst_23 : f32 to vector<8x1xf32>
      %c0_24 = arith.constant 0 : index
      %c0_25 = arith.constant 0 : index
      %44 = vector.load %arg5[%c0_24, %c0_25] : memref<8x1xf32, #tpu.memory_space<vmem>>, vector<8x1xf32>
      tpu.vector_store %arg5[%c0_24, %c0_25], %43 {strides = array<i32>} : memref<8x1xf32, #tpu.memory_space<vmem>>, vector<8x1xf32>,
      %cst_26 = arith.constant 0.000000e+00 : f32
      %45 = vector.broadcast %cst_26 : f32 to vector<8x1xf32>
      %c0_27 = arith.constant 0 : index
      %c0_28 = arith.constant 0 : index
      %46 = vector.load %arg6[%c0_27, %c0_28] : memref<8x1xf32, #tpu.memory_space<vmem>>, vector<8x1xf32>
      tpu.vector_store %arg6[%c0_27, %c0_28], %45 {strides = array<i32>} : memref<8x1xf32, #tpu.memory_space<vmem>>, vector<8x1xf32>,
      %cst_29 = arith.constant 0.000000e+00 : f32
      %47 = vector.broadcast %cst_29 : f32 to vector<8x1xf32>
      %c0_30 = arith.constant 0 : index
      %c0_31 = arith.constant 0 : index
      %48 = vector.load %arg7[%c0_30, %c0_31] : memref<8x1xf32, #tpu.memory_space<vmem>>, vector<8x1xf32>
      tpu.vector_store %arg7[%c0_30, %c0_31], %47 {strides = array<i32>} : memref<8x1xf32, #tpu.memory_space<vmem>>, vector<8x1xf32>,
    } else {
    }
    %c0 = arith.constant 0 : index
    %c0_1 = arith.constant 0 : index
    %3 = vector.load %arg2[%c0, %c0_1] : memref<8x128xf32, #tpu.memory_space<vmem>>, vector<8x128xf32>
    %c0_2 = arith.constant 0 : index
    %c0_3 = arith.constant 0 : index
    %4 = vector.load %arg3[%c0_2, %c0_3] : memref<8x1xi32, #tpu.memory_space<vmem>>, vector<8x1xi32>
    %5 = tpu.iota {dimensions = array<i32: 1>} : vector<8x128xi32>
    %c128_i32 = arith.constant 128 : i32
    %6 = arith.muli %arg1, %c128_i32 : i32
    %c32_i32 = arith.constant 32 : i32
    %7 = arith.subi %c32_i32, %6 : i32
    %8 = vector.broadcast %7 : i32 to vector<8x128xi32>
    %9 = arith.cmpi slt, %5, %8 : vector<8x128xi32>
    %cst = arith.constant -1.000000e+30 : f32
    %10 = vector.broadcast %cst : f32 to vector<8x128xf32>
    %11 = arith.select %9, %3, %10 : vector<8x128xi1>, vector<8x128xf32>
    %c128_i32_4 = arith.constant 128 : i32
    %12 = arith.muli %arg1, %c128_i32_4 : i32
    %13 = vector.broadcast %12 : i32 to vector<8x1xi32>
    %14 = arith.subi %4, %13 : vector<8x1xi32>
    %15 = vector.broadcast %14 : vector<8x1xi32> to vector<8x128xi32>
    %16 = arith.cmpi eq, %5, %15 : vector<8x128xi32>
    %c0_5 = arith.constant 0 : index
    %c0_6 = arith.constant 0 : index
    %17 = vector.load %arg5[%c0_5, %c0_6] : memref<8x1xf32, #tpu.memory_space<vmem>>, vector<8x1xf32>
    %cst_7 = arith.constant dense<0xFF800000> : vector<8xf32>
    %18 = vector.multi_reduction <maximumf>, %11, %cst_7 [1] : vector<8x128xf32> to vector<8xf32>
    %19 = vector.shape_cast %18 : vector<8xf32> to vector<8x1xf32>
    %20 = arith.maximumf %17, %19 : vector<8x1xf32>
    %c0_8 = arith.constant 0 : index
    %c0_9 = arith.constant 0 : index
    %21 = vector.load %arg6[%c0_8, %c0_9] : memref<8x1xf32, #tpu.memory_space<vmem>>, vector<8x1xf32>
    %22 = arith.subf %17, %20 : vector<8x1xf32>
    %23 = math.exp %22 : vector<8x1xf32>
    %24 = arith.mulf %21, %23 : vector<8x1xf32>
    %25 = vector.broadcast %20 : vector<8x1xf32> to vector<8x128xf32>
    %26 = arith.subf %11, %25 : vector<8x128xf32>
    %27 = math.exp %26 : vector<8x128xf32>
    %cst_10 = arith.constant dense<0.000000e+00> : vector<8xf32>
    %28 = vector.multi_reduction <add>, %27, %cst_10 [1] : vector<8x128xf32> to vector<8xf32>
    %29 = vector.shape_cast %28 : vector<8xf32> to vector<8x1xf32>
    %30 = arith.addf %24, %29 : vector<8x1xf32>
    %c0_11 = arith.constant 0 : index
    %c0_12 = arith.constant 0 : index
    %31 = vector.load %arg6[%c0_11, %c0_12] : memref<8x1xf32, #tpu.memory_space<vmem>>, vector<8x1xf32>
    tpu.vector_store %arg6[%c0_11, %c0_12], %30 {strides = array<i32>} : memref<8x1xf32, #tpu.memory_space<vmem>>, vector<8x1xf32>,
    %c0_13 = arith.constant 0 : index
    %c0_14 = arith.constant 0 : index
    %32 = vector.load %arg5[%c0_13, %c0_14] : memref<8x1xf32, #tpu.memory_space<vmem>>, vector<8x1xf32>
    tpu.vector_store %arg5[%c0_13, %c0_14], %20 {strides = array<i32>} : memref<8x1xf32, #tpu.memory_space<vmem>>, vector<8x1xf32>,
    %c0_15 = arith.constant 0 : index
    %c0_16 = arith.constant 0 : index
    %33 = vector.load %arg7[%c0_15, %c0_16] : memref<8x1xf32, #tpu.memory_space<vmem>>, vector<8x1xf32>
    %cst_17 = arith.constant 0.000000e+00 : f32
    %34 = vector.broadcast %cst_17 : f32 to vector<8x128xf32>
    %35 = arith.select %16, %11, %34 : vector<8x128xi1>, vector<8x128xf32>
    %cst_18 = arith.constant dense<0.000000e+00> : vector<8xf32>
    %36 = vector.multi_reduction <add>, %35, %cst_18 [1] : vector<8x128xf32> to vector<8xf32>
    %37 = vector.shape_cast %36 : vector<8xf32> to vector<8x1xf32>
    %38 = arith.addf %33, %37 : vector<8x1xf32>
    %c0_19 = arith.constant 0 : index
    %c0_20 = arith.constant 0 : index
    %39 = vector.load %arg7[%c0_19, %c0_20] : memref<8x1xf32, #tpu.memory_space<vmem>>, vector<8x1xf32>
    tpu.vector_store %arg7[%c0_19, %c0_20], %38 {strides = array<i32>} : memref<8x1xf32, #tpu.memory_space<vmem>>, vector<8x1xf32>,
    %c0_i32_21 = arith.constant 0 : i32
    %40 = arith.cmpi eq, %arg1, %c0_i32_21 : i32
    %41 = arith.extui %40 : i1 to i32
    %c0_i32_22 = arith.constant 0 : i32
    %42 = arith.cmpi ne, %41, %c0_i32_22 : i32
    scf.if %42 {
      %c0_23 = arith.constant 0 : index
      %c0_24 = arith.constant 0 : index
      %43 = vector.load %arg5[%c0_23, %c0_24] : memref<8x1xf32, #tpu.memory_space<vmem>>, vector<8x1xf32>
      %c0_25 = arith.constant 0 : index
      %c0_26 = arith.constant 0 : index
      %44 = vector.load %arg6[%c0_25, %c0_26] : memref<8x1xf32, #tpu.memory_space<vmem>>, vector<8x1xf32>
      %45 = math.log %44 : vector<8x1xf32>
      %46 = arith.addf %43, %45 : vector<8x1xf32>
      %c0_27 = arith.constant 0 : index
      %c0_28 = arith.constant 0 : index
      %47 = vector.load %arg7[%c0_27, %c0_28] : memref<8x1xf32, #tpu.memory_space<vmem>>, vector<8x1xf32>
      %48 = arith.subf %47, %46 : vector<8x1xf32>
      %cst_29 = arith.constant 0.000000e+00 : f32
      %49 = vector.broadcast %cst_29 : f32 to vector<8x1xf32>
      %50 = arith.minimumf %48, %49 : vector<8x1xf32>
      %51 = math.exp %50 : vector<8x1xf32>
      %cst_30 = arith.constant 1.000000e+00 : f32
      %52 = vector.broadcast %cst_30 : f32 to vector<8x1xf32>
      %53 = arith.subf %52, %51 : vector<8x1xf32>
      %54 = arith.mulf %53, %53 : vector<8x1xf32>
      %cst_31 = arith.constant 0.000000e+00 : f32
      %55 = vector.broadcast %cst_31 : f32 to vector<8x1xf32>
      %56 = arith.subf %55, %54 : vector<8x1xf32>
      %57 = arith.mulf %56, %50 : vector<8x1xf32>
      %58 = vector.shape_cast %57 : vector<8x1xf32> to vector<1x1x8xf32>
      %c0_32 = arith.constant 0 : index
      %c0_33 = arith.constant 0 : index
      %c0_34 = arith.constant 0 : index
      %59 = vector.load %arg4[%c0_32, %c0_33, %c0_34] : memref<1x1x8xf32, #tpu.memory_space<vmem>>, vector<1x1x8xf32>
      tpu.vector_store %arg4[%c0_32, %c0_33, %c0_34], %58 {strides = array<i32>} : memref<1x1x8xf32, #tpu.memory_space<vmem>>, vector<1x1x8xf32>,
    } else {
    }
    return
  }
  func.func @transform_0(%arg0: i32, %arg1: i32) -> (i32, i32) {
    %c0_i32 = arith.constant 0 : i32
    return %arg0, %arg1 : i32, i32
  }
  func.func @transform_1(%arg0: i32, %arg1: i32) -> (i32, i32) {
    %c0_i32 = arith.constant 0 : i32
    %c0_i32_0 = arith.constant 0 : i32
    return %arg0, %c0_i32 : i32, i32
  }
  func.func @transform_2(%arg0: i32, %arg1: i32) -> (i32, i32, i32) {
    %c0_i32 = arith.constant 0 : i32
    %c0_i32_0 = arith.constant 0 : i32
    %c0_i32_1 = arith.constant 0 : i32
    return %arg0, %c0_i32, %c0_i32_0 : i32, i32, i32
  }
}

</mosaic_0001>

<llo_original>
// kernel: tpu_custom_call.1
$region0: #{tpu_custom_call.1}
  #allocation0 [shape = 'u32[]', space=smem, size = 0x4, offset = 0x4, fixed_abs, tag = 'smem constant byte address 0x4 - core index']
  #allocation1 [shape = 'u32[144,128]{1,0:T(1,128)}', space=vmem, size = 0x12000, scoped, tag = 'internal scratch']
  #allocation2 [shape = 'f32[8,1]{1,0:T(8,128)}', space=vmem, size = 0x1000, scoped, tag = 'scratch operand']
  #allocation3 [shape = 'f32[8,1]{1,0:T(8,128)}', space=vmem, size = 0x1000, scoped, tag = 'scratch operand']
  #allocation4 [shape = 'f32[8,1]{1,0:T(8,128)}', space=vmem, size = 0x1000, scoped, tag = 'scratch operand']
  %s0 = inlined_call_operand.vmem [shape: f32[8,32], index: 0, kind: input, shape index: {}]
  %s1 = inlined_call_operand.vmem [shape: s32[8,1], index: 1, kind: input, shape index: {}]
  %s2 = inlined_call_operand.hbm [shape: f32[1,1,8], index: 2, kind: output, shape index: {}]
  %s3 = sld [smem:[#allocation0]]
  $region26: #{tpu_custom_call.1} parent=0
    _
  %s5 = ssub.s32 1, %s3
  %s6 = scalar_select 0, %s5, %s3
  $region1: #{tpu_custom_call.1} parent=0
    #allocation5 [shape = 'u8[512]{0}', space=vmem, size = 0x400, scoped, tag = 'output window, operand 0, single buffered']
    #allocation6 [shape = 's32[1]{0}', space=sflag, size = 0x4, scoped, tag = 'scoped memory for tpu_custom_call.1']
    %7 = vsyncpa [#allocation6], 0
    // Predicated region
    $region2: #{tpu_custom_call.1} parent=1 // pred_check
      _
    $region3: #{tpu_custom_call.1} parent=1 // pred_check_branch
      %9 = sbr.rel (0) target = $region5
    $region4: #{tpu_custom_call.1} parent=1 // pred_region
      _
    $region5: #{tpu_custom_call.1} parent=1 // pred_fallthru
      _
    // Predicated region
    $region6: #{tpu_custom_call.1} parent=1 // pred_check
      _
    $region7: #{tpu_custom_call.1} parent=1 // pred_check_branch
      %11 = sbr.rel (0) target = $region9
    $region8: #{tpu_custom_call.1} parent=1 // pred_region
      _
    $region9: #{tpu_custom_call.1} parent=1 // pred_fallthru
      _
    %p12 = scmp.eq.s32.totalorder 0, 0
    // Predicated region
    $region10: #{tpu_custom_call.1} parent=1 // pred_check
      %p13 = pneg %p12
    $region11: #{tpu_custom_call.1} parent=1 // pred_check_branch
      %15 = sbr.rel (%p13) target = $region13
    $region12: #{tpu_custom_call.1} parent=1 // pred_region
      %vm16 = vcmask 7168
      %17 = vst.msk [vmem:[#allocation2] sm:$0xff] %vm16, -1e+30
      %18 = vst.msk [vmem:[#allocation3] sm:$0xff] %vm16, 0.0
      %19 = vst.msk [vmem:[#allocation4] sm:$0xff] %vm16, 0.0
    $region13: #{tpu_custom_call.1} parent=1 // pred_fallthru
      _
    %v20 = vld [vmem:[%s0] sm:$0xff]
    %v21 = vld [vmem:[%s1] sm:$0xff]
    %v22 = vlaneseq
    %v23 = vand.u32 %v22, 127
    %s24 = smul.u32 0, 128
    %s25 = ssub.s32 32, %s24
    %v26 = vstv %s25
    %vm27 = vcmp.lt.s32.totalorder %v23, %v26
    %v28 = vsel %vm27, %v20, -1e+30
    %v29 = vstv %s24
    %v30 = vsub.s32 %v21, %v29
    %31 = vset.pattern.permute.xlu0 0
    %32 = vperm.xlu0 %31, %v30
    %v33 = vpop.permute.xlu0 %32
    %vm34 = vcmp.eq.s32.totalorder %v23, %v33
    %v35 = vld [vmem:[#allocation2] sm:$0xff]
    %36 = vmax.xlane.f32.xlu0 %v28
    %v37 = vpop.xlane.xlu0 %36
    %v38 = vmax.f32 %v35, %v37
    %v39 = vld [vmem:[#allocation3] sm:$0xff]
    %v40 = vsub.f32 %v35, %v38
    %v41 = vmul.f32 %v40, 1.442695
    %v42 = vpow.pop %v41
    %v43 = vmul.f32 %v39, %v42
    %45 = vset.pattern.permute.xlu0 0
    %46 = vperm.xlu0 %45, %v38
    %v47 = vpop.permute.xlu0 %46
    %v49 = vsub.f32 %v28, %v47
    %v50 = vmul.f32 %v49, 1.442695
    %v51 = vpow.pop %v50
    %52 = vadd.xlane.f32.xlu0 %v51
    %v53 = vpop.xlane.xlu0 %52
    %v54 = vadd.f32 %v43, %v53
    %vm55 = vcmask 7168
    %56 = vst.msk [vmem:[#allocation3] sm:$0xff] %vm55, %v54
    %57 = vst.msk [vmem:[#allocation2] sm:$0xff] %vm55, %v38
    %v58 = vld [vmem:[#allocation4] sm:$0xff]
    %v59 = vsel %vm34, %v28, 0.0
    %60 = vadd.xlane.f32.xlu0 %v59
    %v61 = vpop.xlane.xlu0 %60
    %v62 = vadd.f32 %v58, %v61
    %63 = vst.msk [vmem:[#allocation4] sm:$0xff] %vm55, %v62
    // Predicated region
    $region14: #{tpu_custom_call.1} parent=1 // pred_check
      %p64 = pneg %p12
    $region15: #{tpu_custom_call.1} parent=1 // pred_check_branch
      %66 = sbr.rel (%p64) target = $region17
    $region16: #{tpu_custom_call.1} parent=1 // pred_region
      %v67 = vld [vmem:[#allocation2] sm:$0xff]
      %v68 = vld [vmem:[#allocation3] sm:$0xff]
      %v69 = vlog2.pop %v68
      %v70 = vmul.f32 %v69, 0.6931472
      %v71 = vadd.f32 %v67, %v70
      %v72 = vld [vmem:[#allocation4] sm:$0xff]
      %v73 = vsub.f32 %v72, %v71
      %v74 = vmin.f32 %v73, 0.0
      %v75 = vmul.f32 %v74, 1.442695
      %v76 = vpow.pop %v75
      %v77 = vsub.f32 1.0, %v76
      %v78 = vmul.f32 %v77, %v77
      %v79 = vsub.f32 0.0, %v78
      %v80 = vmul.f32 %v79, %v74
      %82 = vset.pattern.permute.xlu0 0
      %83 = vperm.xlu0 %82, %v80
      %v84 = vpop.permute.xlu0 %83
      %v85 = vlaneseq
      %v86 = vshrl.u32 %v85, 7
      %v87 = vsub.s32 %v23, %v86
      %v88 = vrot.slane %v84, %v87
      %vm90 = vcmask 57344
      %91 = vst.msk [vmem:[#allocation5] sm:$0x1] %vm90, %v88
    $region17: #{tpu_custom_call.1} parent=1 // pred_fallthru
      _
    // Predicated region
    $region18: #{tpu_custom_call.1} parent=1 // pred_check
      _
    $region19: #{tpu_custom_call.1} parent=1 // pred_check_branch
      %93 = sbr.rel (0) target = $region21
    $region20: #{tpu_custom_call.1} parent=1 // pred_region
      %s95 = ssub.s32 16, 16
      %96 = vsyncadd [#allocation6], %s95
      %s98 = sshll.u32 [#allocation5], 4
      %s99 = int_to_ptr.vmem [resolvable:$true] %s98
      %101 = dma.vmem_to_hbm [thread:$0]  %s99, 16, %s2, [#allocation6]
    $region21: #{tpu_custom_call.1} parent=1 // pred_fallthru
      _
    // Predicated region
    $region22: #{tpu_custom_call.1} parent=1 // pred_check
      _
    $region23: #{tpu_custom_call.1} parent=1 // pred_check_branch
      %103 = sbr.rel (0) target = $region25
    $region24: #{tpu_custom_call.1} parent=1 // pred_region
      %104 = dma.done [#allocation6], 16
    $region25: #{tpu_custom_call.1} parent=1 // pred_fallthru
      _
    %105 = vsyncpa [#allocation6], 1

</llo_original>
